<compile_context>
chip_gen: v5e
topology: v5e:2x2
jax: 0.10.0
libtpu: 0.0.40
codegen_flags: <defaults>
</compile_context>

<pallas_src>
import functools
import math

import jax
import jax.numpy as jnp
from jax.experimental import pallas as pl
from jax.experimental.pallas import tpu as pltpu

_NEG_BIG = -1e30  # large negative instead of -inf for masked scores (exp -> 0)


def _flash_attn_kernel(n_valid, masked,
                       xq_ref, xkv_ref, w_ref, b_ref,
                       z_ref, m_sc, l_sc, acc_sc):
    """Pass 1: z = softmax(Q K^T / sqrt(8), axis=-1) @ V, tiled with online softmax.

    xq_ref:  (tq, 3)  query rows of X
    xkv_ref: (tk, 3)  key/value rows of X
    w_ref:   (3, 17)  [Wq^T/sqrt(8) | Wk^T | Wv^T]
    b_ref:   (1, 17)  [bq/sqrt(8)   | bk   | bv  ]
    z_ref:   (tq, 1)  output block (resident across the kv axis)
    """
    ki = pl.program_id(1)

    @pl.when(ki == 0)
    def _init():
        m_sc[...] = jnp.full_like(m_sc, -jnp.inf)
        l_sc[...] = jnp.zeros_like(l_sc)
        acc_sc[...] = jnp.zeros_like(acc_sc)

    w = w_ref[...]
    b = b_ref[...]

    # Projections (scale already folded into the Q columns of w/b).
    q = jnp.dot(xq_ref[...], w[:, 0:8],
                preferred_element_type=jnp.float32) + b[:, 0:8]          # (tq, 8)
    kv = jnp.dot(xkv_ref[...], w[:, 8:17],
                 preferred_element_type=jnp.float32) + b[:, 8:17]        # (tk, 9)
    k = kv[:, 0:8]                                                       # (tk, 8)
    v = kv[:, 8:9]                                                       # (tk, 1)

    # Scores: contract the feature axis of both operands -> no K transpose.
    s = jax.lax.dot_general(q, k, (((1,), (1,)), ((), ())),
                            preferred_element_type=jnp.float32)          # (tq, tk)

    if masked:
        tk = s.shape[1]
        col = ki * tk + jax.lax.broadcasted_iota(jnp.int32, s.shape, 1)
        s = jnp.where(col < n_valid, s, _NEG_BIG)

    m_prev = m_sc[...]
    m_new = jnp.maximum(m_prev, jnp.max(s, axis=-1, keepdims=True))
    alpha = jnp.exp(m_prev - m_new)
    p = jnp.exp(s - m_new)                                               # (tq, tk)
    l_sc[...] = alpha * l_sc[...] + jnp.sum(p, axis=-1, keepdims=True)
    acc_sc[...] = alpha * acc_sc[...] + jnp.dot(
        p, v, preferred_element_type=jnp.float32)                        # (tq, 1)
    m_sc[...] = m_new

    @pl.when(ki == pl.num_programs(1) - 1)
    def _finalize():
        # Reciprocal-multiply on the O(N) denominator (EUP), not an NxN divide.
        z_ref[...] = acc_sc[...] * pl.reciprocal(l_sc[...], approx=True)


def _softmax_axis0_kernel(n_valid, masked, z_ref, out_ref):
    """Pass 2: softmax over all N rows of z, lane-dense (1, N) layout."""
    z = z_ref[...]                                                       # (1, n_pad)
    if masked:
        col = jax.lax.broadcasted_iota(jnp.int32, z.shape, 1)
        z = jnp.where(col < n_valid, z, _NEG_BIG)
    m = jnp.max(z, axis=-1, keepdims=True)
    e = jnp.exp(z - m)
    denom = jnp.sum(e, axis=-1, keepdims=True)                           # (1, 1)
    # Denominator is a single element; exact reciprocal costs the same as approx.
    out_ref[...] = e * pl.reciprocal(denom, approx=False)


def _round_up(a, b):
    return ((a + b - 1) // b) * b


def self_attn_forward(x, wq, bq, wk, bk, wv, bv, *, max_tile=512):
    """x: (N, 3). Weights in PyTorch layout: wq/wk (8, 3), wv (1, 3)."""
    n = x.shape[0]
    tile = min(max_tile, _round_up(max(n, 1), 8))
    n_pad = _round_up(n, tile)
    masked = n_pad != n

    x32 = x.astype(jnp.float32)
    if masked:
        x32 = jnp.pad(x32, ((0, n_pad - n), (0, 0)))

    # Fold the 1/sqrt(8) attention scale into Wq/bq; fuse Q|K|V weights.
    scale = 1.0 / math.sqrt(8.0)
    w_fused = jnp.concatenate(
        [wq.T * scale, wk.T, wv.T], axis=1).astype(jnp.float32)          # (3, 17)
    b_fused = jnp.concatenate(
        [bq * scale, bk, bv]).reshape(1, 17).astype(jnp.float32)         # (1, 17)

    n_q = n_pad // tile
    n_kv = n_pad // tile

    cost = pl.CostEstimate(
        flops=2 * n_pad * n_pad * (8 + 1) + 2 * n_pad * 3 * 17 * (1 + n_q),
        transcendentals=n_pad * n_pad + 3 * n_pad,
        bytes_accessed=4 * (n_pad * 3 * (1 + n_q) + 2 * 3 * 17 + n_pad),
    )

    z = pl.pallas_call(
        functools.partial(_flash_attn_kernel, n, masked),
        out_shape=jax.ShapeDtypeStruct((n_pad, 1), jnp.float32),
        grid_spec=pltpu.PrefetchScalarGridSpec(
            num_scalar_prefetch=0,
            grid=(n_q, n_kv),
            in_specs=[
                pl.BlockSpec((tile, 3), lambda qi, ki: (qi, 0)),   # X (query rows)
                pl.BlockSpec((tile, 3), lambda qi, ki: (ki, 0)),   # X (kv rows)
                pl.BlockSpec((3, 17), lambda qi, ki: (0, 0)),      # fused weights
                pl.BlockSpec((1, 17), lambda qi, ki: (0, 0)),      # fused biases
            ],
            out_specs=pl.BlockSpec((tile, 1), lambda qi, ki: (qi, 0)),
            scratch_shapes=[pltpu.VMEM((tile, 1), jnp.float32)] * 3,  # m, l, acc
        ),
        compiler_params=pltpu.CompilerParams(
            dimension_semantics=("parallel", "arbitrary"),
            vmem_limit_bytes=32 * 1024 * 1024,
        ),
        cost_estimate=cost,
    )(x32, x32, w_fused, b_fused)

    # (n_pad, 1) and (1, n_pad) share the same row-major layout, so this reshape
    # is free; it hands pass 2 a lane-dense input (lane-axis reduce, unmasked stores).
    z_lane = z.reshape(1, n_pad)

    vmem = pltpu.MemorySpace.VMEM
    out = pl.pallas_call(
        functools.partial(_softmax_axis0_kernel, n, masked),
        out_shape=jax.ShapeDtypeStruct((1, n_pad), jnp.float32),
        in_specs=[pl.BlockSpec(memory_space=vmem)],
        out_specs=pl.BlockSpec(memory_space=vmem),
    )(z_lane)

    return out[0, :n]                          # (N,) — matches torch .squeeze()


def _linear_init(key, out_features, in_features):
    """Deterministic init matching PyTorch nn.Linear default (uniform ±1/sqrt(fan_in))."""
    kw, kb = jax.random.split(key)
    bound = 1.0 / math.sqrt(in_features)
    w = jax.random.uniform(kw, (out_features, in_features), jnp.float32,
                           minval=-bound, maxval=bound)
    b = jax.random.uniform(kb, (out_features,), jnp.float32,
                           minval=-bound, maxval=bound)
    return w, b


def _reference(x, wq, bq, wk, bk, wv, bv):
    q = x @ wq.T + bq
    k = x @ wk.T + bk
    v = x @ wv.T + bv
    attn = jax.nn.softmax(q @ k.T / math.sqrt(8.0), axis=-1)
    return jnp.squeeze(jax.nn.softmax(attn @ v, axis=0))


if __name__ == "__main__":
    key = jax.random.PRNGKey(0)
    kx, kq, kk, kv_key, kx2 = jax.random.split(key, 5)

    wq, bq = _linear_init(kq, 8, 3)
    wk, bk = _linear_init(kk, 8, 3)
    wv, bv = _linear_init(kv_key, 1, 3)

    # Small shape from the module spec: sequence of 8 tokens, 3 features.
    N = 8
    x = jax.random.normal(kx, (N, 3), jnp.float32)
    out = jax.block_until_ready(self_attn_forward(x, wq, bq, wk, bk, wv, bv))
    ref = _reference(x, wq, bq, wk, bk, wv, bv)
    assert out.shape == (N,)
    assert jnp.allclose(out, ref, rtol=5e-3, atol=1e-5), \
        float(jnp.max(jnp.abs(out - ref)))

    # Non-multiple-of-tile case: exercises the multi-tile online softmax and the
    # padded-column/row masking paths (tile=512 -> padded to 1024, 2x2 grid).
    N2 = 600
    x2 = jax.random.normal(kx2, (N2, 3), jnp.float32)
    out2 = jax.block_until_ready(self_attn_forward(x2, wq, bq, wk, bk, wv, bv))
    ref2 = _reference(x2, wq, bq, wk, bk, wv, bv)
    assert out2.shape == (N2,)
    assert jnp.allclose(out2, ref2, rtol=5e-3, atol=2e-5), \
        float(jnp.max(jnp.abs(out2 - ref2)))
    assert abs(float(jnp.sum(out2)) - 1.0) < 1e-2

    print("KERNEL_OK")
</pallas_src>

<mosaic_0001>
module attributes {stable_mosaic.version = 11 : i64} {
  func.func @_flash_attn_kernel(%arg0: i32, %arg1: i32, %arg2: memref<8x3xf32, #tpu.memory_space<vmem>>, %arg3: memref<8x3xf32, #tpu.memory_space<vmem>>, %arg4: memref<3x17xf32, #tpu.memory_space<vmem>>, %arg5: memref<1x17xf32, #tpu.memory_space<vmem>>, %arg6: memref<8x1xf32, #tpu.memory_space<vmem>>, %arg7: memref<8x1xf32, #tpu.memory_space<vmem>>, %arg8: memref<8x1xf32, #tpu.memory_space<vmem>>, %arg9: memref<8x1xf32, #tpu.memory_space<vmem>>) attributes {dimension_semantics = [#tpu.dimension_semantics<parallel>, #tpu.dimension_semantics<arbitrary>], iteration_bounds = array<i64: 1, 1>, scalar_prefetch = 0 : i64, scratch_operands = 3 : i64, tpu.core_type = #tpu.core_type<tc>, window_params = [{transform_indices = @transform_0, window_bounds = array<i64: 8, 3>}, {transform_indices = @transform_1, window_bounds = array<i64: 8, 3>}, {pipeline_mode = #tpu.pipeline_mode<synchronous>, transform_indices = @transform_2, window_bounds = array<i64: 3, 17>}, {pipeline_mode = #tpu.pipeline_mode<synchronous>, transform_indices = @transform_3, window_bounds = array<i64: 1, 17>}, {transform_indices = @transform_4, window_bounds = array<i64: 8, 1>}]} {
    %c0_i32 = arith.constant 0 : i32
    %0 = arith.cmpi eq, %arg1, %c0_i32 : i32
    %1 = arith.extui %0 : i1 to i32
    %c0_i32_0 = arith.constant 0 : i32
    %2 = arith.cmpi ne, %1, %c0_i32_0 : i32
    scf.if %2 {
      %cst_27 = arith.constant 0xFF800000 : f32
      %44 = vector.broadcast %cst_27 : f32 to vector<8x1xf32>
      %c0_28 = arith.constant 0 : index
      %c0_29 = arith.constant 0 : index
      %45 = vector.load %arg7[%c0_28, %c0_29] : memref<8x1xf32, #tpu.memory_space<vmem>>, vector<8x1xf32>
      tpu.vector_store %arg7[%c0_28, %c0_29], %44 {strides = array<i32>} : memref<8x1xf32, #tpu.memory_space<vmem>>, vector<8x1xf32>,
      %cst_30 = arith.constant 0.000000e+00 : f32
      %46 = vector.broadcast %cst_30 : f32 to vector<8x1xf32>
      %c0_31 = arith.constant 0 : index
      %c0_32 = arith.constant 0 : index
      %47 = vector.load %arg8[%c0_31, %c0_32] : memref<8x1xf32, #tpu.memory_space<vmem>>, vector<8x1xf32>
      tpu.vector_store %arg8[%c0_31, %c0_32], %46 {strides = array<i32>} : memref<8x1xf32, #tpu.memory_space<vmem>>, vector<8x1xf32>,
      %cst_33 = arith.constant 0.000000e+00 : f32
      %48 = vector.broadcast %cst_33 : f32 to vector<8x1xf32>
      %c0_34 = arith.constant 0 : index
      %c0_35 = arith.constant 0 : index
      %49 = vector.load %arg9[%c0_34, %c0_35] : memref<8x1xf32, #tpu.memory_space<vmem>>, vector<8x1xf32>
      tpu.vector_store %arg9[%c0_34, %c0_35], %48 {strides = array<i32>} : memref<8x1xf32, #tpu.memory_space<vmem>>, vector<8x1xf32>,
    } else {
    }
    %c0 = arith.constant 0 : index
    %c0_1 = arith.constant 0 : index
    %3 = vector.load %arg4[%c0, %c0_1] : memref<3x17xf32, #tpu.memory_space<vmem>>, vector<3x17xf32>
    %c0_2 = arith.constant 0 : index
    %c0_3 = arith.constant 0 : index
    %4 = vector.load %arg5[%c0_2, %c0_3] : memref<1x17xf32, #tpu.memory_space<vmem>>, vector<1x17xf32>
    %c0_4 = arith.constant 0 : index
    %c0_5 = arith.constant 0 : index
    %5 = vector.load %arg2[%c0_4, %c0_5] : memref<8x3xf32, #tpu.memory_space<vmem>>, vector<8x3xf32>
    %6 = vector.extract_strided_slice %3 {offsets = [0, 0], sizes = [3, 8], strides = [1, 1]} : vector<3x17xf32> to vector<3x8xf32>
    %cst = arith.constant dense<0.000000e+00> : vector<8x8xf32>
    %7 = tpu.matmul %5, %6, %cst {dimension_numbers = #tpu.dot_dimension_numbers<[1], [0], [0], [1], [0, 0, 1, 1], [], []>} : vector<8x3xf32>, vector<3x8xf32>, vector<8x8xf32> -> vector<8x8xf32>
    %8 = vector.extract_strided_slice %4 {offsets = [0, 0], sizes = [1, 8], strides = [1, 1]} : vector<1x17xf32> to vector<1x8xf32>
    %9 = vector.broadcast %8 : vector<1x8xf32> to vector<8x8xf32>
    %10 = arith.addf %7, %9 : vector<8x8xf32>
    %c0_6 = arith.constant 0 : index
    %c0_7 = arith.constant 0 : index
    %11 = vector.load %arg3[%c0_6, %c0_7] : memref<8x3xf32, #tpu.memory_space<vmem>>, vector<8x3xf32>
    %12 = vector.extract_strided_slice %3 {offsets = [0, 8], sizes = [3, 9], strides = [1, 1]} : vector<3x17xf32> to vector<3x9xf32>
    %cst_8 = arith.constant dense<0.000000e+00> : vector<8x9xf32>
    %13 = tpu.matmul %11, %12, %cst_8 {dimension_numbers = #tpu.dot_dimension_numbers<[1], [0], [0], [1], [0, 0, 1, 1], [], []>} : vector<8x3xf32>, vector<3x9xf32>, vector<8x9xf32> -> vector<8x9xf32>
    %14 = vector.extract_strided_slice %4 {offsets = [0, 8], sizes = [1, 9], strides = [1, 1]} : vector<1x17xf32> to vector<1x9xf32>
    %15 = vector.broadcast %14 : vector<1x9xf32> to vector<8x9xf32>
    %16 = arith.addf %13, %15 : vector<8x9xf32>
    %17 = vector.extract_strided_slice %16 {offsets = [0, 0], sizes = [8, 8], strides = [1, 1]} : vector<8x9xf32> to vector<8x8xf32>
    %18 = vector.extract_strided_slice %16 {offsets = [0, 8], sizes = [8, 1], strides = [1, 1]} : vector<8x9xf32> to vector<8x1xf32>
    %cst_9 = arith.constant dense<0.000000e+00> : vector<8x8xf32>
    %19 = tpu.matmul %10, %17, %cst_9 {dimension_numbers = #tpu.dot_dimension_numbers<[1], [1], [0], [0], [0, 0, 1, 0], [], []>} : vector<8x8xf32>, vector<8x8xf32>, vector<8x8xf32> -> vector<8x8xf32>
    %c0_10 = arith.constant 0 : index
    %c0_11 = arith.constant 0 : index
    %20 = vector.load %arg7[%c0_10, %c0_11] : memref<8x1xf32, #tpu.memory_space<vmem>>, vector<8x1xf32>
    %cst_12 = arith.constant dense<0xFF800000> : vector<8xf32>
    %21 = vector.multi_reduction <maximumf>, %19, %cst_12 [1] : vector<8x8xf32> to vector<8xf32>
    %22 = vector.shape_cast %21 : vector<8xf32> to vector<8x1xf32>
    %23 = arith.maximumf %20, %22 : vector<8x1xf32>
    %24 = arith.subf %20, %23 : vector<8x1xf32>
    %25 = math.exp %24 : vector<8x1xf32>
    %26 = vector.broadcast %23 : vector<8x1xf32> to vector<8x8xf32>
    %27 = arith.subf %19, %26 : vector<8x8xf32>
    %28 = math.exp %27 : vector<8x8xf32>
    %c0_13 = arith.constant 0 : index
    %c0_14 = arith.constant 0 : index
    %29 = vector.load %arg8[%c0_13, %c0_14] : memref<8x1xf32, #tpu.memory_space<vmem>>, vector<8x1xf32>
    %30 = arith.mulf %25, %29 : vector<8x1xf32>
    %cst_15 = arith.constant dense<0.000000e+00> : vector<8xf32>
    %31 = vector.multi_reduction <add>, %28, %cst_15 [1] : vector<8x8xf32> to vector<8xf32>
    %32 = vector.shape_cast %31 : vector<8xf32> to vector<8x1xf32>
    %33 = arith.addf %30, %32 : vector<8x1xf32>
    %c0_16 = arith.constant 0 : index
    %c0_17 = arith.constant 0 : index
    %34 = vector.load %arg8[%c0_16, %c0_17] : memref<8x1xf32, #tpu.memory_space<vmem>>, vector<8x1xf32>
    tpu.vector_store %arg8[%c0_16, %c0_17], %33 {strides = array<i32>} : memref<8x1xf32, #tpu.memory_space<vmem>>, vector<8x1xf32>,
    %c0_18 = arith.constant 0 : index
    %c0_19 = arith.constant 0 : index
    %35 = vector.load %arg9[%c0_18, %c0_19] : memref<8x1xf32, #tpu.memory_space<vmem>>, vector<8x1xf32>
    %36 = arith.mulf %25, %35 : vector<8x1xf32>
    %cst_20 = arith.constant dense<0.000000e+00> : vector<8x1xf32>
    %37 = tpu.matmul %28, %18, %cst_20 {dimension_numbers = #tpu.dot_dimension_numbers<[1], [0], [0], [1], [0, 0, 1, 1], [], []>} : vector<8x8xf32>, vector<8x1xf32>, vector<8x1xf32> -> vector<8x1xf32>
    %38 = arith.addf %36, %37 : vector<8x1xf32>
    %c0_21 = arith.constant 0 : index
    %c0_22 = arith.constant 0 : index
    %39 = vector.load %arg9[%c0_21, %c0_22] : memref<8x1xf32, #tpu.memory_space<vmem>>, vector<8x1xf32>
    tpu.vector_store %arg9[%c0_21, %c0_22], %38 {strides = array<i32>} : memref<8x1xf32, #tpu.memory_space<vmem>>, vector<8x1xf32>,
    %c0_23 = arith.constant 0 : index
    %c0_24 = arith.constant 0 : index
    %40 = vector.load %arg7[%c0_23, %c0_24] : memref<8x1xf32, #tpu.memory_space<vmem>>, vector<8x1xf32>
    tpu.vector_store %arg7[%c0_23, %c0_24], %23 {strides = array<i32>} : memref<8x1xf32, #tpu.memory_space<vmem>>, vector<8x1xf32>,
    %c0_i32_25 = arith.constant 0 : i32
    %41 = arith.cmpi eq, %arg1, %c0_i32_25 : i32
    %42 = arith.extui %41 : i1 to i32
    %c0_i32_26 = arith.constant 0 : i32
    %43 = arith.cmpi ne, %42, %c0_i32_26 : i32
    scf.if %43 {
      %c0_27 = arith.constant 0 : index
      %c0_28 = arith.constant 0 : index
      %44 = vector.load %arg9[%c0_27, %c0_28] : memref<8x1xf32, #tpu.memory_space<vmem>>, vector<8x1xf32>
      %c0_29 = arith.constant 0 : index
      %c0_30 = arith.constant 0 : index
      %45 = vector.load %arg8[%c0_29, %c0_30] : memref<8x1xf32, #tpu.memory_space<vmem>>, vector<8x1xf32>
      %46 = tpu.reciprocal %45 {approx = true} : vector<8x1xf32> -> vector<8x1xf32>
      %47 = arith.mulf %44, %46 : vector<8x1xf32>
      %c0_31 = arith.constant 0 : index
      %c0_32 = arith.constant 0 : index
      %48 = vector.load %arg6[%c0_31, %c0_32] : memref<8x1xf32, #tpu.memory_space<vmem>>, vector<8x1xf32>
      tpu.vector_store %arg6[%c0_31, %c0_32], %47 {strides = array<i32>} : memref<8x1xf32, #tpu.memory_space<vmem>>, vector<8x1xf32>,
    } else {
    }
    return
  }
  func.func @transform_0(%arg0: i32, %arg1: i32) -> (i32, i32) {
    %c0_i32 = arith.constant 0 : i32
    %c0_i32_0 = arith.constant 0 : i32
    return %arg0, %c0_i32 : i32, i32
  }
  func.func @transform_1(%arg0: i32, %arg1: i32) -> (i32, i32) {
    %c0_i32 = arith.constant 0 : i32
    %c0_i32_0 = arith.constant 0 : i32
    return %arg1, %c0_i32 : i32, i32
  }
  func.func @transform_2(%arg0: i32, %arg1: i32) -> (i32, i32) {
    %c0_i32 = arith.constant 0 : i32
    %c0_i32_0 = arith.constant 0 : i32
    %c0_i32_1 = arith.constant 0 : i32
    return %c0_i32, %c0_i32_0 : i32, i32
  }
  func.func @transform_3(%arg0: i32, %arg1: i32) -> (i32, i32) {
    %c0_i32 = arith.constant 0 : i32
    %c0_i32_0 = arith.constant 0 : i32
    %c0_i32_1 = arith.constant 0 : i32
    return %c0_i32, %c0_i32_0 : i32, i32
  }
  func.func @transform_4(%arg0: i32, %arg1: i32) -> (i32, i32) {
    %c0_i32 = arith.constant 0 : i32
    %c0_i32_0 = arith.constant 0 : i32
    return %arg0, %c0_i32 : i32, i32
  }
}

</mosaic_0001>

<llo_original>
// kernel: tpu_custom_call.1
$region0: #{tpu_custom_call.1}
  #allocation0 [shape = 'u32[]', space=smem, size = 0x4, offset = 0x4, fixed_abs, tag = 'smem constant byte address 0x4 - core index']
  #allocation1 [shape = 'u32[72,128]{1,0:T(1,128)}', space=vmem, size = 0x9000, scoped, tag = 'internal scratch']
  #allocation2 [shape = 'f32[8,1]{1,0:T(8,128)}', space=vmem, size = 0x1000, scoped, tag = 'scratch operand']
  #allocation3 [shape = 'f32[8,1]{1,0:T(8,128)}', space=vmem, size = 0x1000, scoped, tag = 'scratch operand']
  #allocation4 [shape = 'f32[8,1]{1,0:T(8,128)}', space=vmem, size = 0x1000, scoped, tag = 'scratch operand']
  %s0 = inlined_call_operand.vmem [shape: f32[8,3], index: 0, kind: input, shape index: {}]
  %s1 = inlined_call_operand.vmem [shape: f32[8,3], index: 1, kind: input, shape index: {}]
  %s2 = inlined_call_operand.vmem [shape: f32[3,17], index: 2, kind: input, shape index: {}]
  %s3 = inlined_call_operand.vmem [shape: f32[1,17], index: 3, kind: input, shape index: {}]
  %s4 = inlined_call_operand.vmem [shape: f32[8,1], index: 4, kind: output, shape index: {}]
  %s5 = sld [smem:[#allocation0]]
  $region34: #{tpu_custom_call.1} parent=0
    _
  %s7 = ssub.s32 1, %s5
  %s8 = scalar_select 0, %s7, %s5
  // Predicated region
  $region2: #{tpu_custom_call.1} parent=0 // pred_check
    _
  $region3: #{tpu_custom_call.1} parent=0 // pred_check_branch
    %10 = sbr.rel (0) target = $region5
  $region4: #{tpu_custom_call.1} parent=0 // pred_region
    _
  $region5: #{tpu_custom_call.1} parent=0 // pred_fallthru
    _
  // Predicated region
  $region6: #{tpu_custom_call.1} parent=0 // pred_check
    _
  $region7: #{tpu_custom_call.1} parent=0 // pred_check_branch
    %12 = sbr.rel (0) target = $region9
  $region8: #{tpu_custom_call.1} parent=0 // pred_region
    _
  $region9: #{tpu_custom_call.1} parent=0 // pred_fallthru
    _
  // Predicated region
  $region10: #{tpu_custom_call.1} parent=0 // pred_check
    _
  $region11: #{tpu_custom_call.1} parent=0 // pred_check_branch
    %14 = sbr.rel (0) target = $region13
  $region12: #{tpu_custom_call.1} parent=0 // pred_region
    _
  $region13: #{tpu_custom_call.1} parent=0 // pred_fallthru
    _
  // Predicated region
  $region14: #{tpu_custom_call.1} parent=0 // pred_check
    _
  $region15: #{tpu_custom_call.1} parent=0 // pred_check_branch
    %16 = sbr.rel (0) target = $region17
  $region16: #{tpu_custom_call.1} parent=0 // pred_region
    _
  $region17: #{tpu_custom_call.1} parent=0 // pred_fallthru
    _
  %p17 = scmp.eq.s32.totalorder 0, 0
  // Predicated region
  $region18: #{tpu_custom_call.1} parent=0 // pred_check
    %p18 = pneg %p17
  $region19: #{tpu_custom_call.1} parent=0 // pred_check_branch
    %20 = sbr.rel (%p18) target = $region21
  $region20: #{tpu_custom_call.1} parent=0 // pred_region
    %vm21 = vcmask 7168
    %22 = vst.msk [vmem:[#allocation2] sm:$0xff] %vm21, -inf
    %23 = vst.msk [vmem:[#allocation3] sm:$0xff] %vm21, 0.0
    %24 = vst.msk [vmem:[#allocation4] sm:$0xff] %vm21, 0.0
  $region21: #{tpu_custom_call.1} parent=0 // pred_fallthru
    _
  %v25 = vld [vmem:[%s2] sm:$0x7]
  %v26 = vld [vmem:[%s3] sm:$0x1]
  %v27 = vld [vmem:[%s0] sm:$0xff]
  %v29 = vperm.slane %v26, 0
  %vm31 = vcmask 23552
  %v33 = vsel %vm31, %v27, 0
  %vm35 = vcmask 1042432
  %v37 = vsel %vm35, %v25, 0
  %39 = vmatpush.msra.mxu0 0.0
  %40 = vmatpush.msra.mxu0 0.0
  %41 = vmatpush.msra.mxu0 0.0
  %42 = vmatpush.msra.mxu0 0.0
  %43 = vmatpush.msra.mxu0 0.0
  %44 = vmatpush.msra.mxu0 0.0
  %45 = vmatpush.msra.mxu0 0.0
  %46 = vmatpush.msra.mxu0 0.0
  %47 = vmatpush.msra.mxu0 0.0
  %48 = vmatpush.msra.mxu0 0.0
  %49 = vmatpush.msra.mxu0 0.0
  %50 = vmatpush.msra.mxu0 0.0
  %51 = vmatpush.msra.mxu0 0.0
  %52 = vmatpush.msra.mxu0 0.0
  %53 = vmatpush.msra.mxu0 0.0
  %54 = vmatpush.msra.mxu0 %v37
  %55 = vmatmul.f32.gmra.mxu0 %v33
  %v56 = vpop.f32.mrf.mxu0
  %v57 = vadd.f32 %v29, %v56
  %58 = vdwg.mxu0
  %v59 = vld [vmem:[%s1] sm:$0xff]
  %60 = vrot.lane.b32.xlu0 %v25, 120
  %v61 = vpop.permute.xlu0 %60
  %62 = vrot.lane.b32.xlu0 %v29, 120
  %v63 = vpop.permute.xlu0 %62
  %v66 = vsel %vm31, %v59, 0
  %v68 = vsel %vm35, %v61, 0
  %70 = vmatpush.msra.mxu0 0.0
  %71 = vmatpush.msra.mxu0 0.0
  %72 = vmatpush.msra.mxu0 0.0
  %73 = vmatpush.msra.mxu0 0.0
  %74 = vmatpush.msra.mxu0 0.0
  %75 = vmatpush.msra.mxu0 0.0
  %76 = vmatpush.msra.mxu0 0.0
  %77 = vmatpush.msra.mxu0 0.0
  %78 = vmatpush.msra.mxu0 0.0
  %79 = vmatpush.msra.mxu0 0.0
  %80 = vmatpush.msra.mxu0 0.0
  %81 = vmatpush.msra.mxu0 0.0
  %82 = vmatpush.msra.mxu0 0.0
  %83 = vmatpush.msra.mxu0 0.0
  %84 = vmatpush.msra.mxu0 0.0
  %85 = vmatpush.msra.mxu0 %v68
  %86 = vmatmul.f32.gmra.mxu0 %v66
  %v87 = vpop.f32.mrf.mxu0
  %v88 = vadd.f32 %v63, %v87
  %89 = vdwg.mxu0
  %vm90 = vcmask 64512
  %v92 = vsel %vm90, %v57, 0
  %v95 = vsel %vm90, %v88, 0
  %97 = vmatpush.xpose.msra.mxu0 0.0
  %98 = vmatpush.xpose.msra.mxu0 0.0
  %99 = vmatpush.xpose.msra.mxu0 0.0
  %100 = vmatpush.xpose.msra.mxu0 0.0
  %101 = vmatpush.xpose.msra.mxu0 0.0
  %102 = vmatpush.xpose.msra.mxu0 0.0
  %103 = vmatpush.xpose.msra.mxu0 0.0
  %104 = vmatpush.xpose.msra.mxu0 0.0
  %105 = vmatpush.xpose.msra.mxu0 0.0
  %106 = vmatpush.xpose.msra.mxu0 0.0
  %107 = vmatpush.xpose.msra.mxu0 0.0
  %108 = vmatpush.xpose.msra.mxu0 0.0
  %109 = vmatpush.xpose.msra.mxu0 0.0
  %110 = vmatpush.xpose.msra.mxu0 0.0
  %111 = vmatpush.xpose.msra.mxu0 0.0
  %112 = vmatpush.xpose.msra.mxu0 %v95
  %113 = vmatmul.f32.gmra.mxu0 %v92
  %v114 = vpop.f32.mrf.mxu0
  %v115 = vadd.f32 0.0, %v114
  %116 = vdwg.mxu0
  %v117 = vld [vmem:[#allocation2] sm:$0xff]
  %v118 = vsel %vm90, %v115, -inf
  %119 = vmax.xlane.f32.xlu0 %v118
  %v120 = vpop.xlane.xlu0 %119
  %v121 = vmax.f32 %v117, %v120
  %v122 = vsub.f32 %v117, %v121
  %v123 = vmul.f32 %v122, 1.442695
  %v124 = vpow.pop %v123
  %126 = vset.pattern.permute.xlu0 0
  %127 = vperm.xlu0 %126, %v121
  %v128 = vpop.permute.xlu0 %127
  %v130 = vsub.f32 %v115, %v128
  %v131 = vmul.f32 %v130, 1.442695
  %v132 = vpow.pop %v131
  %v133 = vld [vmem:[#allocation3] sm:$0xff]
  %v134 = vmul.f32 %v124, %v133
  %v135 = vsel %vm90, %v132, 0.0
  %136 = vadd.xlane.f32.xlu0 %v135
  %v137 = vpop.xlane.xlu0 %136
  %v138 = vadd.f32 %v134, %v137
  %vm139 = vcmask 7168
  %140 = vst.msk [vmem:[#allocation3] sm:$0xff] %vm139, %v138
  %v141 = vld [vmem:[#allocation4] sm:$0xff]
  %v142 = vmul.f32 %v124, %v141
  %143 = vrot.lane.b32.xlu0 %v88, 120
  %v144 = vpop.permute.xlu0 %143
  %v147 = vsel %vm90, %v132, 0
  %149 = vmatpush.msra.mxu0 0.0
  %150 = vmatpush.msra.mxu0 0.0
  %151 = vmatpush.msra.mxu0 0.0
  %152 = vmatpush.msra.mxu0 0.0
  %153 = vmatpush.msra.mxu0 0.0
  %154 = vmatpush.msra.mxu0 0.0
  %155 = vmatpush.msra.mxu0 0.0
  %156 = vmatpush.msra.mxu0 0.0
  %157 = vmatpush.msra.mxu0 0.0
  %158 = vmatpush.msra.mxu0 0.0
  %159 = vmatpush.msra.mxu0 0.0
  %160 = vmatpush.msra.mxu0 0.0
  %161 = vmatpush.msra.mxu0 0.0
  %162 = vmatpush.msra.mxu0 0.0
  %163 = vmatpush.msra.mxu0 0.0
  %164 = vmatpush.msra.mxu0 %v144
  %165 = vmatmul.f32.gmra.mxu0 %v147
  %v166 = vpop.f32.mrf.mxu0
  %v167 = vadd.f32 0.0, %v166
  %168 = vdwg.mxu0
  %v169 = vadd.f32 %v142, %v167
  %170 = vst.msk [vmem:[#allocation4] sm:$0xff] %vm139, %v169
  %171 = vst.msk [vmem:[#allocation2] sm:$0xff] %vm139, %v121
  // Predicated region
  $region22: #{tpu_custom_call.1} parent=0 // pred_check
    %p172 = pneg %p17
  $region23: #{tpu_custom_call.1} parent=0 // pred_check_branch
    %174 = sbr.rel (%p172) target = $region25
  $region24: #{tpu_custom_call.1} parent=0 // pred_region
    %v175 = vld [vmem:[#allocation4] sm:$0xff]
    %v176 = vld [vmem:[#allocation3] sm:$0xff]
    %v177 = vrcp.pop %v176
    %v178 = vmul.f32 %v175, %v177
    %179 = vst.msk [vmem:[%s4] sm:$0xff] %vm139, %v178
  $region25: #{tpu_custom_call.1} parent=0 // pred_fallthru
    _
  // Predicated region
  $region26: #{tpu_custom_call.1} parent=0 // pred_check
    _
  $region27: #{tpu_custom_call.1} parent=0 // pred_check_branch
    %181 = sbr.rel (0) target = $region29
  $region28: #{tpu_custom_call.1} parent=0 // pred_region
    _
  $region29: #{tpu_custom_call.1} parent=0 // pred_fallthru
    _
  // Predicated region
  $region30: #{tpu_custom_call.1} parent=0 // pred_check
    _
  $region31: #{tpu_custom_call.1} parent=0 // pred_check_branch
    %183 = sbr.rel (0) target = $region33
  $region32: #{tpu_custom_call.1} parent=0 // pred_region
    _
  $region33: #{tpu_custom_call.1} parent=0 // pred_fallthru
    _

</llo_original>
